<compile_context>
chip_gen: v7x
topology: tpu7x:2x2x1
jax: 0.10.0
libtpu: 0.0.40
codegen_flags: <defaults>
</compile_context>

<pallas_src>
import jax
import jax.numpy as jnp
from jax.experimental import pallas as pl
from jax.experimental.pallas import tpu as pltpu


def _round_up(x, m):
    return (x + m - 1) // m * m


def _decode(logits, gdc):
    if gdc == "ip":
        # sigmoid via a single EUP op: 0.5*(tanh(x/2)+1) == sigmoid(x)
        # (halves EUP pressure vs exp + divide lowering; decode scales as B*N*M).
        return 0.5 * (jnp.tanh(0.5 * logits) + 1.0)
    # 'bp': clamp(max=25) then 1 - exp(-exp(.)); clamp(min=-inf) is a no-op.
    return 1.0 - jnp.exp(-jnp.exp(jnp.minimum(logits, 25.0)))


def _make_kernel(gdc, num_batches):
    """One output tile per grid step; B is folded into the block (no grid-over-B)."""
    inv_b = 1.0 / float(num_batches)

    def kernel(z1_ref, z2t_ref, adj_ref):
        # z1_ref: [B, tn, D]; z2t_ref: [B, D, tm] (RHS already in MXU-natural [K, N]
        # layout, lane-dense on tm); adj_ref: [1, tn, tm] f32.
        def bmm(b):
            return jax.lax.dot_general(
                z1_ref[b], z2t_ref[b],
                dimension_numbers=(((1,), (0,)), ((), ())),
                preferred_element_type=jnp.float32)          # [tn, tm] f32

        # Accumulate decode(z1[b] @ z2[b]^T) directly into the resident output tile.
        adj_ref[0] = _decode(bmm(0), gdc)
        for b in range(1, num_batches):                      # small static B -> unrolled
            adj_ref[0] += _decode(bmm(b), gdc)
        if num_batches > 1:
            adj_ref[0] *= inv_b                              # batch mean, once per tile

    return kernel


def _balanced_tile(dim, max_tile, align):
    """Tile <= max_tile with bounded boundary padding (or the full dim in one block)."""
    if dim <= max_tile:
        return dim                                           # full-extent block (allowed)
    n_blocks = pl.cdiv(dim, max_tile)
    return min(dim, _round_up(pl.cdiv(dim, n_blocks), align))


def _vmem_estimate(batch, d, tn, tm, in_item):
    out_bytes = 2 * tn * tm * 4                              # double-buffered f32 output
    logits_bytes = tn * tm * 4                               # per-batch logits temp
    in_bytes = 2 * batch * (tn * d + d * tm) * in_item       # double-buffered inputs
    return out_bytes + logits_bytes + in_bytes


def graph_decoder(z1, z2, rk_lgt, *, gdc="ip", mxu_dtype=None,
                  max_tile_n=1024, max_tile_m=2048,
                  vmem_budget_bytes=36 * 1024 * 1024):
    """Pallas implementation of GraphDecoder.forward in eval mode.

    z1: [B, N, D], z2: [B, M, D], rk_lgt: [1, D]
    Returns (adj [1, N, M] f32, z1, z2, rk**2 [1, D]).

    mxu_dtype: optional lower-precision dtype (e.g. jnp.bfloat16) fed to the MXU
      on v6e/v7x; accumulation and the decode (sigmoid/exp) path stay in f32.
    """
    B, N, D = z1.shape
    B2, M, D2 = z2.shape
    assert B == B2 and D == D2, "zdim not compatible!"
    assert rk_lgt.shape == (1, D)
    assert gdc in ("ip", "bp")

    # rk = sigmoid(rk_lgt)**0.5; the module returns rk**2 == sigmoid(rk_lgt).
    # Trivial [1, D] elementwise op: keep it out of the kernel entirely.
    rk_sq = jax.nn.sigmoid(rk_lgt.astype(jnp.float32))

    z1_in = z1 if mxu_dtype is None else z1.astype(mxu_dtype)
    z2_in = z2 if mxu_dtype is None else z2.astype(mxu_dtype)
    # Pre-transpose z2 once in the wrapper (cheap: B*M*D elements) so the RHS tile
    # is [D, tm]: MXU-natural layout, lane-dense DMAs, no per-tile XLU transpose.
    z2t = jnp.swapaxes(z2_in, 1, 2)                          # [B, D, M]

    in_item = jnp.dtype(z1_in.dtype).itemsize
    # Sub-32-bit inputs pack (16,128)/(32,128): round the N-tile accordingly.
    n_align = {1: 32, 2: 16}.get(in_item, 8)

    # VMEM cap: leave headroom on v7x (64 MiB physical); 128 MiB on v5e/v6e.
    try:
        cap = int(pltpu.get_tpu_info().vmem_capacity_bytes * 0.6)
    except Exception:  # pragma: no cover - conservative fallback
        cap = 40 * 1024 * 1024
    cap = max(16 * 1024 * 1024, min(cap, 64 * 1024 * 1024))
    budget = min(vmem_budget_bytes, cap - 4 * 1024 * 1024)

    # Balanced tiles (bounded padding) shrunk until the VMEM estimate fits.
    mt_n = _round_up(max_tile_n, n_align)
    mt_m = _round_up(max_tile_m, 128)
    while True:
        tn = _balanced_tile(N, mt_n, n_align)
        tm = _balanced_tile(M, mt_m, 128)
        est = _vmem_estimate(B, D, tn, tm, in_item)
        if est <= budget:
            break
        if mt_m > 256:
            mt_m //= 2
        elif mt_n > 2 * n_align:
            mt_n = max(n_align, _round_up(mt_n // 2, n_align))
        else:
            break  # can't shrink further (extreme B*D); rely on vmem_limit below

    vmem_limit = int(min(cap, max(16 * 1024 * 1024, est + 8 * 1024 * 1024)))

    # No input padding: ragged boundary blocks are masked by Pallas; garbage rows /
    # columns only land in out-of-bounds output positions (elementwise decode), which
    # are dropped on store.
    grid = (pl.cdiv(N, tn), pl.cdiv(M, tm))

    adj = pl.pallas_call(
        _make_kernel(gdc, B),
        out_shape=jax.ShapeDtypeStruct((1, N, M), jnp.float32),
        grid_spec=pltpu.PrefetchScalarGridSpec(
            num_scalar_prefetch=0,
            grid=grid,
            in_specs=[
                # z1 tile depends only on i -> re-fetch elided across the inner j axis.
                pl.BlockSpec((B, tn, D), lambda i, j: (0, i, 0)),
                pl.BlockSpec((B, D, tm), lambda i, j: (0, 0, j)),
            ],
            out_specs=pl.BlockSpec((1, tn, tm), lambda i, j: (0, i, j)),
        ),
        compiler_params=pltpu.CompilerParams(
            dimension_semantics=("parallel", "parallel"),   # disjoint tiles -> v7x 2 TCs
            vmem_limit_bytes=vmem_limit),
    )(z1_in, z2t)

    # eval mode: dropout is the identity -> z1, z2 returned unchanged.
    return adj, z1, z2, rk_sq


def _reference(z1, z2, rk_lgt, gdc="ip"):
    logits = jnp.einsum("bnd,bmd->bnm", z1, z2,
                        precision=jax.lax.Precision.HIGHEST)
    if gdc == "ip":
        adj = jax.nn.sigmoid(logits)
    else:
        adj = 1.0 - jnp.exp(-jnp.exp(jnp.minimum(logits, 25.0)))
    adj = jnp.mean(adj, axis=0, keepdims=True)
    return adj, z1, z2, jax.nn.sigmoid(rk_lgt)


if __name__ == "__main__":
    key = jax.random.PRNGKey(0)
    k1, k2, k3, k4, k5 = jax.random.split(key, 5)

    # ---- tiny shape (typical toy usage): grid (1,1), full-extent blocks ----
    B, N, M, D = 2, 8, 8, 32
    z1 = jax.random.normal(k1, (B, N, D), dtype=jnp.float32)
    z2 = jax.random.normal(k2, (B, M, D), dtype=jnp.float32)
    # reset_parameters: uniform_(rk_lgt, a=-6.0, b=0.0)
    rk_lgt = jax.random.uniform(k3, (1, D), minval=-6.0, maxval=0.0,
                                dtype=jnp.float32)

    for gdc in ("ip", "bp"):
        adj, z1o, z2o, rk_sq = graph_decoder(z1, z2, rk_lgt, gdc=gdc)
        jax.block_until_ready((adj, z1o, z2o, rk_sq))
        adj_r, _, _, rk_r = _reference(z1, z2, rk_lgt, gdc=gdc)
        assert adj.shape == (1, N, M) and rk_sq.shape == (1, D)
        assert jnp.allclose(adj, adj_r, atol=1e-4, rtol=1e-4)
        assert jnp.allclose(rk_sq, rk_r, atol=1e-6, rtol=1e-6)
        assert jnp.allclose(z1o, z1) and jnp.allclose(z2o, z2)

    # ---- larger shape: multi-tile grid with ragged boundary blocks (no padding) ----
    B, N, M, D = 2, 200, 333, 32
    z1b = jax.random.normal(k4, (B, N, D), dtype=jnp.float32)
    z2b = jax.random.normal(k5, (B, M, D), dtype=jnp.float32)
    adj_r, _, _, _ = _reference(z1b, z2b, rk_lgt, gdc="ip")

    adj, z1o, z2o, _ = graph_decoder(z1b, z2b, rk_lgt, gdc="ip",
                                     max_tile_n=128, max_tile_m=128)
    jax.block_until_ready(adj)
    assert adj.shape == (1, N, M)
    assert jnp.allclose(adj, adj_r, atol=1e-4, rtol=1e-4)
    assert jnp.allclose(z1o, z1b) and jnp.allclose(z2o, z2b)

    # 'bp' decode on the tiled path
    adj_bp, _, _, _ = graph_decoder(z1b, z2b, rk_lgt, gdc="bp",
                                    max_tile_n=128, max_tile_m=128)
    jax.block_until_ready(adj_bp)
    adj_bp_r, _, _, _ = _reference(z1b, z2b, rk_lgt, gdc="bp")
    assert jnp.allclose(adj_bp, adj_bp_r, atol=1e-4, rtol=1e-4)

    # ---- bf16 MXU inputs (v6e/v7x optimization; f32 accumulate + decode) ----
    adj_bf16, _, _, _ = graph_decoder(z1b, z2b, rk_lgt, gdc="ip",
                                      mxu_dtype=jnp.bfloat16)
    jax.block_until_ready(adj_bf16)
    assert adj_bf16.shape == (1, N, M)
    assert jnp.allclose(adj_bf16, adj_r, atol=3e-2, rtol=0)

    print("KERNEL_OK")
</pallas_src>

<mosaic_0001>
module attributes {stable_mosaic.version = 11 : i64} {
  func.func @kernel(%arg0: i32, %arg1: i32, %arg2: memref<2x8x32xf32, #tpu.memory_space<vmem>>, %arg3: memref<2x32x8xf32, #tpu.memory_space<vmem>>, %arg4: memref<1x8x8xf32, #tpu.memory_space<vmem>>) attributes {dimension_semantics = [#tpu.dimension_semantics<parallel>, #tpu.dimension_semantics<parallel>], iteration_bounds = array<i64: 1, 1>, scalar_prefetch = 0 : i64, scratch_operands = 0 : i64, tpu.core_type = #tpu.core_type<tc>, window_params = [{transform_indices = @transform_0, window_bounds = array<i64: 2, 8, 32>}, {transform_indices = @transform_1, window_bounds = array<i64: 2, 32, 8>}, {transform_indices = @transform_2, window_bounds = array<i64: 1, 8, 8>}]} {
    %c0 = arith.constant 0 : index
    %c0_0 = arith.constant 0 : index
    %c0_1 = arith.constant 0 : index
    %0 = vector.load %arg2[%c0, %c0_0, %c0_1] : memref<2x8x32xf32, #tpu.memory_space<vmem>>, vector<1x8x32xf32>
    %1 = vector.shape_cast %0 : vector<1x8x32xf32> to vector<8x32xf32>
    %c0_2 = arith.constant 0 : index
    %c0_3 = arith.constant 0 : index
    %c0_4 = arith.constant 0 : index
    %2 = vector.load %arg3[%c0_2, %c0_3, %c0_4] : memref<2x32x8xf32, #tpu.memory_space<vmem>>, vector<1x32x8xf32>
    %3 = vector.shape_cast %2 : vector<1x32x8xf32> to vector<32x8xf32>
    %cst = arith.constant dense<0.000000e+00> : vector<8x8xf32>
    %4 = tpu.matmul %1, %3, %cst {dimension_numbers = #tpu.dot_dimension_numbers<[1], [0], [0], [1], [0, 0, 1, 1], [], []>} : vector<8x32xf32>, vector<32x8xf32>, vector<8x8xf32> -> vector<8x8xf32>
    %cst_5 = arith.constant 5.000000e-01 : f32
    %5 = vector.broadcast %cst_5 : f32 to vector<8x8xf32>
    %6 = arith.mulf %5, %4 : vector<8x8xf32>
    %7 = math.tanh %6 : vector<8x8xf32>
    %cst_6 = arith.constant 1.000000e+00 : f32
    %8 = vector.broadcast %cst_6 : f32 to vector<8x8xf32>
    %9 = arith.addf %7, %8 : vector<8x8xf32>
    %cst_7 = arith.constant 5.000000e-01 : f32
    %10 = vector.broadcast %cst_7 : f32 to vector<8x8xf32>
    %11 = arith.mulf %10, %9 : vector<8x8xf32>
    %c0_8 = arith.constant 0 : index
    %c0_9 = arith.constant 0 : index
    %c0_10 = arith.constant 0 : index
    %12 = vector.load %arg4[%c0_8, %c0_9, %c0_10] : memref<1x8x8xf32, #tpu.memory_space<vmem>>, vector<1x8x8xf32>
    %13 = vector.shape_cast %12 : vector<1x8x8xf32> to vector<8x8xf32>
    %14 = vector.shape_cast %11 : vector<8x8xf32> to vector<1x8x8xf32>
    tpu.vector_store %arg4[%c0_8, %c0_9, %c0_10], %14 {strides = array<i32>} : memref<1x8x8xf32, #tpu.memory_space<vmem>>, vector<1x8x8xf32>,
    %c0_11 = arith.constant 0 : index
    %c0_12 = arith.constant 0 : index
    %c0_13 = arith.constant 0 : index
    %15 = vector.load %arg4[%c0_11, %c0_12, %c0_13] : memref<1x8x8xf32, #tpu.memory_space<vmem>>, vector<1x8x8xf32>
    %16 = vector.shape_cast %15 : vector<1x8x8xf32> to vector<8x8xf32>
    %c1 = arith.constant 1 : index
    %c0_14 = arith.constant 0 : index
    %c0_15 = arith.constant 0 : index
    %17 = vector.load %arg2[%c1, %c0_14, %c0_15] : memref<2x8x32xf32, #tpu.memory_space<vmem>>, vector<1x8x32xf32>
    %18 = vector.shape_cast %17 : vector<1x8x32xf32> to vector<8x32xf32>
    %c1_16 = arith.constant 1 : index
    %c0_17 = arith.constant 0 : index
    %c0_18 = arith.constant 0 : index
    %19 = vector.load %arg3[%c1_16, %c0_17, %c0_18] : memref<2x32x8xf32, #tpu.memory_space<vmem>>, vector<1x32x8xf32>
    %20 = vector.shape_cast %19 : vector<1x32x8xf32> to vector<32x8xf32>
    %cst_19 = arith.constant dense<0.000000e+00> : vector<8x8xf32>
    %21 = tpu.matmul %18, %20, %cst_19 {dimension_numbers = #tpu.dot_dimension_numbers<[1], [0], [0], [1], [0, 0, 1, 1], [], []>} : vector<8x32xf32>, vector<32x8xf32>, vector<8x8xf32> -> vector<8x8xf32>
    %cst_20 = arith.constant 5.000000e-01 : f32
    %22 = vector.broadcast %cst_20 : f32 to vector<8x8xf32>
    %23 = arith.mulf %22, %21 : vector<8x8xf32>
    %24 = math.tanh %23 : vector<8x8xf32>
    %cst_21 = arith.constant 1.000000e+00 : f32
    %25 = vector.broadcast %cst_21 : f32 to vector<8x8xf32>
    %26 = arith.addf %24, %25 : vector<8x8xf32>
    %cst_22 = arith.constant 5.000000e-01 : f32
    %27 = vector.broadcast %cst_22 : f32 to vector<8x8xf32>
    %28 = arith.mulf %27, %26 : vector<8x8xf32>
    %29 = arith.addf %16, %28 : vector<8x8xf32>
    %c0_23 = arith.constant 0 : index
    %c0_24 = arith.constant 0 : index
    %c0_25 = arith.constant 0 : index
    %30 = vector.load %arg4[%c0_23, %c0_24, %c0_25] : memref<1x8x8xf32, #tpu.memory_space<vmem>>, vector<1x8x8xf32>
    %31 = vector.shape_cast %30 : vector<1x8x8xf32> to vector<8x8xf32>
    %32 = vector.shape_cast %29 : vector<8x8xf32> to vector<1x8x8xf32>
    tpu.vector_store %arg4[%c0_23, %c0_24, %c0_25], %32 {strides = array<i32>} : memref<1x8x8xf32, #tpu.memory_space<vmem>>, vector<1x8x8xf32>,
    %c0_26 = arith.constant 0 : index
    %c0_27 = arith.constant 0 : index
    %c0_28 = arith.constant 0 : index
    %33 = vector.load %arg4[%c0_26, %c0_27, %c0_28] : memref<1x8x8xf32, #tpu.memory_space<vmem>>, vector<1x8x8xf32>
    %34 = vector.shape_cast %33 : vector<1x8x8xf32> to vector<8x8xf32>
    %cst_29 = arith.constant 5.000000e-01 : f32
    %35 = vector.broadcast %cst_29 : f32 to vector<8x8xf32>
    %36 = arith.mulf %34, %35 : vector<8x8xf32>
    %c0_30 = arith.constant 0 : index
    %c0_31 = arith.constant 0 : index
    %c0_32 = arith.constant 0 : index
    %37 = vector.load %arg4[%c0_30, %c0_31, %c0_32] : memref<1x8x8xf32, #tpu.memory_space<vmem>>, vector<1x8x8xf32>
    %38 = vector.shape_cast %37 : vector<1x8x8xf32> to vector<8x8xf32>
    %39 = vector.shape_cast %36 : vector<8x8xf32> to vector<1x8x8xf32>
    tpu.vector_store %arg4[%c0_30, %c0_31, %c0_32], %39 {strides = array<i32>} : memref<1x8x8xf32, #tpu.memory_space<vmem>>, vector<1x8x8xf32>,
    return
  }
  func.func @transform_0(%arg0: i32, %arg1: i32) -> (i32, i32, i32) {
    %c0_i32 = arith.constant 0 : i32
    %c0_i32_0 = arith.constant 0 : i32
    %c0_i32_1 = arith.constant 0 : i32
    return %c0_i32, %arg0, %c0_i32_0 : i32, i32, i32
  }
  func.func @transform_1(%arg0: i32, %arg1: i32) -> (i32, i32, i32) {
    %c0_i32 = arith.constant 0 : i32
    %c0_i32_0 = arith.constant 0 : i32
    %c0_i32_1 = arith.constant 0 : i32
    return %c0_i32, %c0_i32_0, %arg1 : i32, i32, i32
  }
  func.func @transform_2(%arg0: i32, %arg1: i32) -> (i32, i32, i32) {
    %c0_i32 = arith.constant 0 : i32
    %c0_i32_0 = arith.constant 0 : i32
    return %c0_i32, %arg0, %arg1 : i32, i32, i32
  }
}

</mosaic_0001>

<llo_original>
// kernel: tpu_custom_call.1
$region0: #{tpu_custom_call.1}
  #allocation0 [shape = 'u32[]', space=smem, size = 0x4, offset = 0x4, fixed_abs, tag = 'smem constant byte address 0x4 - core index']
  #allocation1 [shape = 'u32[144,128]{1,0:T(1,128)}', space=vmem, size = 0x12000, scoped, tag = 'internal scratch']
  %s0 = inlined_call_operand.vmem [shape: f32[2,8,32], index: 0, kind: input, shape index: {}]
  %s1 = inlined_call_operand.vmem [shape: f32[2,32,8], index: 1, kind: input, shape index: {}]
  %s2 = inlined_call_operand.hbm [shape: f32[1,8,8], index: 2, kind: output, shape index: {}]
  %s3 = sld [smem:[#allocation0]]
  $region18: #{tpu_custom_call.1} parent=0
    _
  %s5 = ssub.s32 1, %s3
  %s6 = scalar_select 0, %s5, %s3
  $region1: #{tpu_custom_call.1} parent=0
    #allocation2 [shape = 'u8[4096]{0}', space=vmem, size = 0x1000, scoped, tag = 'output window, operand 0, single buffered']
    #allocation3 [shape = 's32[1]{0}', space=sflag, size = 0x4, scoped, tag = 'scoped memory for tpu_custom_call.1']
    %7 = vsyncpa [#allocation3], 0
    // Predicated region
    $region2: #{tpu_custom_call.1} parent=1 // pred_check
      _
    $region3: #{tpu_custom_call.1} parent=1 // pred_check_branch
      %9 = sbr.rel (0) target = $region5
    $region4: #{tpu_custom_call.1} parent=1 // pred_region
      _
    $region5: #{tpu_custom_call.1} parent=1 // pred_fallthru
      _
    // Predicated region
    $region6: #{tpu_custom_call.1} parent=1 // pred_check
      _
    $region7: #{tpu_custom_call.1} parent=1 // pred_check_branch
      %11 = sbr.rel (0) target = $region9
    $region8: #{tpu_custom_call.1} parent=1 // pred_region
      _
    $region9: #{tpu_custom_call.1} parent=1 // pred_fallthru
      _
    %v12 = vld [vmem:[%s0] sm:$0xff]
    %v13 = vld [vmem:[%s1] sm:$0xff]
    %v14 = vld [vmem:[%s1 + $0x8] sm:$0xff]
    %v15 = vld [vmem:[%s1 + $0x10] sm:$0xff]
    %v16 = vld [vmem:[%s1 + $0x18] sm:$0xff]
    %vm17 = vcmask 261120
    %v19 = vsel %vm17, %v12, 0
    %21 = vmatprep.subr.mxu0 0.0
    %22 = vmatpush1.msra.mxu0 %v13
    %23 = vmatprep.subr.mxu0 0.0
    %24 = vmatpush1.msra.mxu0 %v14
    %25 = vmatprep.subr.mxu0 0.0
    %26 = vmatpush1.msra.mxu0 %v15
    %27 = vmatprep.subr.mxu0 0.0
    %28 = vmatpush1.msra.mxu0 %v16
    %29 = vmatprep.subr.mxu0 0.0
    %30 = vmatpush1.msra.mxu0 0.0
    %31 = vmatprep.subr.mxu0 0.0
    %32 = vmatpush1.msra.mxu0 0.0
    %33 = vmatprep.subr.mxu0 0.0
    %34 = vmatpush1.msra.mxu0 0.0
    %35 = vmatprep.subr.mxu0 0.0
    %36 = vmatpush1.msra.mxu0 0.0
    %37 = vmatprep.subr.mxu0 0.0
    %38 = vmatpush1.msra.mxu0 0.0
    %39 = vmatprep.subr.mxu0 0.0
    %40 = vmatpush1.msra.mxu0 0.0
    %41 = vmatprep.subr.mxu0 0.0
    %42 = vmatpush1.msra.mxu0 0.0
    %43 = vmatprep.subr.mxu0 0.0
    %44 = vmatpush1.msra.mxu0 0.0
    %45 = vmatprep.subr.mxu0 0.0
    %46 = vmatpush1.msra.mxu0 0.0
    %47 = vmatprep.subr.mxu0 0.0
    %48 = vmatpush1.msra.mxu0 0.0
    %49 = vmatprep.subr.mxu0 0.0
    %50 = vmatpush1.msra.mxu0 0.0
    %51 = vmatprep.subr.mxu0 0.0
    %52 = vmatpush1.msra.mxu0 0.0
    %53 = vmatprep.subr.mxu0 0.0
    %54 = vmatpush1.msra.mxu0 0.0
    %55 = vmatprep.subr.mxu0 0.0
    %56 = vmatpush1.msra.mxu0 0.0
    %57 = vmatprep.subr.mxu0 0.0
    %58 = vmatpush1.msra.mxu0 0.0
    %59 = vmatprep.subr.mxu0 0.0
    %60 = vmatpush1.msra.mxu0 0.0
    %61 = vmatprep.subr.mxu0 0.0
    %62 = vmatpush1.msra.mxu0 0.0
    %63 = vmatprep.subr.mxu0 0.0
    %64 = vmatpush1.msra.mxu0 0.0
    %65 = vmatprep.subr.mxu0 0.0
    %66 = vmatpush1.msra.mxu0 0.0
    %67 = vmatprep.subr.mxu0 0.0
    %68 = vmatpush1.msra.mxu0 0.0
    %69 = vmatprep.subr.mxu0 0.0
    %70 = vmatpush1.msra.mxu0 0.0
    %71 = vmatprep.subr.mxu0 0.0
    %72 = vmatpush1.msra.mxu0 0.0
    %73 = vmatprep.subr.mxu0 0.0
    %74 = vmatpush1.msra.mxu0 0.0
    %75 = vmatprep.subr.mxu0 0.0
    %76 = vmatpush1.msra.mxu0 0.0
    %77 = vmatprep.subr.mxu0 0.0
    %78 = vmatpush1.msra.mxu0 0.0
    %79 = vmatprep.subr.mxu0 0.0
    %80 = vmatpush1.msra.mxu0 0.0
    %81 = vmatprep.subr.mxu0 0.0
    %82 = vmatpush1.msra.mxu0 0.0
    %83 = vmatprep.subr.mxu0 0.0
    %84 = vmatpush1.msra.mxu0 0.0
    %85 = vmatprep.mubr.f32.mxu0 0.0
    %86 = vmatmul.mubr.f32.gmra.mrb[0].mxu0 %v19
    %v87 = vpop.f32.mrb[0].mxu0
    %v88 = vadd.f32 0.0, %v87
    %v89 = vpop.f32.mrb[0].mxu0
    %90 = vdwg.mxu0
    %v91 = vmul.f32 %v88, 0.5
    %v92 = vtanh.pop %v91
    %v93 = vadd.f32 %v92, 1.0
    %v94 = vmul.f32 %v93, 0.5
    %vm95 = vcmask 64512
    %96 = vst.msk [vmem:[#allocation2] sm:$0xff] %vm95, %v94
    %v97 = vld [vmem:[#allocation2] sm:$0xff]
    %s98 = scalar_lea.vmem %s0, 8
    %v99 = vld [vmem:[%s98] sm:$0xff]
    %s100 = scalar_lea.vmem %s1, 32
    %v101 = vld [vmem:[%s100] sm:$0xff]
    %v102 = vld [vmem:[%s100 + $0x8] sm:$0xff]
    %v103 = vld [vmem:[%s100 + $0x10] sm:$0xff]
    %v104 = vld [vmem:[%s100 + $0x18] sm:$0xff]
    %v106 = vsel %vm17, %v99, 0
    %108 = vmatprep.subr.mxu0 0.0
    %109 = vmatpush1.msra.mxu0 %v101
    %110 = vmatprep.subr.mxu0 0.0
    %111 = vmatpush1.msra.mxu0 %v102
    %112 = vmatprep.subr.mxu0 0.0
    %113 = vmatpush1.msra.mxu0 %v103
    %114 = vmatprep.subr.mxu0 0.0
    %115 = vmatpush1.msra.mxu0 %v104
    %116 = vmatprep.subr.mxu0 0.0
    %117 = vmatpush1.msra.mxu0 0.0
    %118 = vmatprep.subr.mxu0 0.0
    %119 = vmatpush1.msra.mxu0 0.0
    %120 = vmatprep.subr.mxu0 0.0
    %121 = vmatpush1.msra.mxu0 0.0
    %122 = vmatprep.subr.mxu0 0.0
    %123 = vmatpush1.msra.mxu0 0.0
    %124 = vmatprep.subr.mxu0 0.0
    %125 = vmatpush1.msra.mxu0 0.0
    %126 = vmatprep.subr.mxu0 0.0
    %127 = vmatpush1.msra.mxu0 0.0
    %128 = vmatprep.subr.mxu0 0.0
    %129 = vmatpush1.msra.mxu0 0.0
    %130 = vmatprep.subr.mxu0 0.0
    %131 = vmatpush1.msra.mxu0 0.0
    %132 = vmatprep.subr.mxu0 0.0
    %133 = vmatpush1.msra.mxu0 0.0
    %134 = vmatprep.subr.mxu0 0.0
    %135 = vmatpush1.msra.mxu0 0.0
    %136 = vmatprep.subr.mxu0 0.0
    %137 = vmatpush1.msra.mxu0 0.0
    %138 = vmatprep.subr.mxu0 0.0
    %139 = vmatpush1.msra.mxu0 0.0
    %140 = vmatprep.subr.mxu0 0.0
    %141 = vmatpush1.msra.mxu0 0.0
    %142 = vmatprep.subr.mxu0 0.0
    %143 = vmatpush1.msra.mxu0 0.0
    %144 = vmatprep.subr.mxu0 0.0
    %145 = vmatpush1.msra.mxu0 0.0
    %146 = vmatprep.subr.mxu0 0.0
    %147 = vmatpush1.msra.mxu0 0.0
    %148 = vmatprep.subr.mxu0 0.0
    %149 = vmatpush1.msra.mxu0 0.0
    %150 = vmatprep.subr.mxu0 0.0
    %151 = vmatpush1.msra.mxu0 0.0
    %152 = vmatprep.subr.mxu0 0.0
    %153 = vmatpush1.msra.mxu0 0.0
    %154 = vmatprep.subr.mxu0 0.0
    %155 = vmatpush1.msra.mxu0 0.0
    %156 = vmatprep.subr.mxu0 0.0
    %157 = vmatpush1.msra.mxu0 0.0
    %158 = vmatprep.subr.mxu0 0.0
    %159 = vmatpush1.msra.mxu0 0.0
    %160 = vmatprep.subr.mxu0 0.0
    %161 = vmatpush1.msra.mxu0 0.0
    %162 = vmatprep.subr.mxu0 0.0
    %163 = vmatpush1.msra.mxu0 0.0
    %164 = vmatprep.subr.mxu0 0.0
    %165 = vmatpush1.msra.mxu0 0.0
    %166 = vmatprep.subr.mxu0 0.0
    %167 = vmatpush1.msra.mxu0 0.0
    %168 = vmatprep.subr.mxu0 0.0
    %169 = vmatpush1.msra.mxu0 0.0
    %170 = vmatprep.subr.mxu0 0.0
    %171 = vmatpush1.msra.mxu0 0.0
    %172 = vmatprep.mubr.f32.mxu0 0.0
    %173 = vmatmul.mubr.f32.gmra.mrb[0].mxu0 %v106
    %v174 = vpop.f32.mrb[0].mxu0
    %v175 = vadd.f32 0.0, %v174
    %v176 = vpop.f32.mrb[0].mxu0
    %177 = vdwg.mxu0
    %v178 = vmul.f32 %v175, 0.5
    %v179 = vtanh.pop %v178
    %v180 = vadd.f32 %v179, 1.0
    %v181 = vmul.f32 %v180, 0.5
    %v182 = vadd.f32 %v97, %v181
    %183 = vst.msk [vmem:[#allocation2] sm:$0xff] %vm95, %v182
    %v184 = vld [vmem:[#allocation2] sm:$0xff]
    %v185 = vmul.f32 %v184, 0.5
    %186 = vst.msk [vmem:[#allocation2] sm:$0xff] %vm95, %v185
    // Predicated region
    $region10: #{tpu_custom_call.1} parent=1 // pred_check
      _
    $region11: #{tpu_custom_call.1} parent=1 // pred_check_branch
      %188 = sbr.rel (0) target = $region13
    $region12: #{tpu_custom_call.1} parent=1 // pred_region
      %s190 = ssub.s32 128, 128
      %191 = vsyncadd [#allocation3], %s190
      %s193 = sshll.u32 [#allocation2], 4
      %s194 = int_to_ptr.vmem [resolvable:$true] %s193
      %196 = dma.vmem_to_hbm [thread:$0]  %s194, 128, %s2, [#allocation3]
    $region13: #{tpu_custom_call.1} parent=1 // pred_fallthru
      _
    // Predicated region
    $region14: #{tpu_custom_call.1} parent=1 // pred_check
      _
    $region15: #{tpu_custom_call.1} parent=1 // pred_check_branch
      %198 = sbr.rel (0) target = $region17
    $region16: #{tpu_custom_call.1} parent=1 // pred_region
      %199 = dma.done [#allocation3], 128
    $region17: #{tpu_custom_call.1} parent=1 // pred_fallthru
      _
    %200 = vsyncpa [#allocation3], 1

</llo_original>
